<compile_context>
chip_gen: v7x
topology: tpu7x:2x2x1
jax: 0.10.0
libtpu: 0.0.40
codegen_flags: <defaults>
</compile_context>

<pallas_src>
import functools

import jax
import jax.numpy as jnp
from jax.experimental import pallas as pl
from jax.experimental.pallas import tpu as pltpu

_SUBLANE = 8


def _round_up(x, m):
    return (x + m - 1) // m * m


def _autoencoder_kernel(x_ref, we_t_ref, wd_t_ref, out_ref):
    """One (TM, F) batch tile of the full forward pass.

    x_ref    : (TM, F)  f32/bf16  flattened input tile (cast to bf16 in-kernel)
    we_t_ref : (F, L)   bf16      encoder.weight.T  (VMEM-resident across tiles)
    wd_t_ref : (L, F)   bf16      decoder.weight.T  (VMEM-resident across tiles)
    out_ref  : (TM, F)  f32       sigmoid(decoded) tile
    """
    x = x_ref[...].astype(jnp.bfloat16)
    # encoded = x @ W_e^T   (bf16 MXU matmul, f32 accumulate)
    encoded = jnp.dot(x, we_t_ref[...], preferred_element_type=jnp.float32)
    # decoded = encoded @ W_d^T
    decoded = jnp.dot(encoded.astype(jnp.bfloat16), wd_t_ref[...],
                      preferred_element_type=jnp.float32)
    # sigmoid: EUP exp + approx reciprocal keeps the epilogue off the VPU
    # Newton-divide path (~1e-3 rel. error; approx=False for exact parity).
    out_ref[...] = pl.reciprocal(1.0 + jnp.exp(-decoded),
                                 approx=True).astype(out_ref.dtype)


def prepare_params(enc_weight, dec_weight):
    """Pre-transpose + cast the torch-convention Linear weights once.

    enc_weight: (latent, input)  -- nn.Linear(input, latent).weight
    dec_weight: (input, latent)  -- nn.Linear(latent, input).weight
    """
    we_t = jnp.asarray(enc_weight).T.astype(jnp.bfloat16)   # (input, latent)
    wd_t = jnp.asarray(dec_weight).T.astype(jnp.bfloat16)   # (latent, input)
    return we_t, wd_t


@functools.partial(jax.jit, static_argnames=("block_m",))
def autoencoder_forward(x, we_t, wd_t, *, block_m=512):
    """x: (B, ...) with prod(...) == input_size (NCHW images accepted).
    we_t / wd_t: outputs of prepare_params (bf16, already transposed).
    Returns f32 (B, input_size), matching torch's `sigmoid(decoder(encoder(x)))`.
    """
    b = x.shape[0]
    x_flat = x.reshape(b, -1)                          # x.view(B, -1)
    in_features = x_flat.shape[1]
    latent = we_t.shape[1]
    assert we_t.shape == (in_features, latent)
    assert wd_t.shape == (latent, in_features)

    # Batch tile: multiple of 8 (sublane), capped at block_m, and sized so the
    # grid has >= 2 steps when the batch allows it (both v7x TensorCores busy).
    tm = max(_SUBLANE, min(block_m, _round_up(pl.cdiv(b, 2), _SUBLANE)))
    grid = (pl.cdiv(b, tm),)   # partial edge block handled by Pallas

    out = pl.pallas_call(
        _autoencoder_kernel,
        out_shape=jax.ShapeDtypeStruct((b, in_features), jnp.float32),
        grid=grid,
        in_specs=[
            pl.BlockSpec((tm, in_features), lambda i: (i, 0)),      # x tile
            pl.BlockSpec((in_features, latent), lambda i: (0, 0)),  # enc W (resident)
            pl.BlockSpec((latent, in_features), lambda i: (0, 0)),  # dec W (resident)
        ],
        out_specs=pl.BlockSpec((tm, in_features), lambda i: (i, 0)),
        compiler_params=pltpu.CompilerParams(
            dimension_semantics=("parallel",),
        ),
    )(x_flat, we_t, wd_t)

    return out


def xavier_uniform(key, shape):
    """torch.nn.init.xavier_uniform_ for a Linear weight of shape (out, in)."""
    fan_out, fan_in = shape
    bound = jnp.sqrt(6.0 / (fan_in + fan_out))
    return jax.random.uniform(key, shape, jnp.float32, -bound, bound)


if __name__ == "__main__":
    input_size = 784      # 28*28 MNIST
    latent_size = 128
    batch = 8

    key = jax.random.PRNGKey(0)
    k_x, k_enc, k_dec = jax.random.split(key, 3)

    # NCHW MNIST-like input (B, 1, 28, 28)
    x = jax.random.uniform(k_x, (batch, 1, 28, 28), jnp.float32)

    # Deterministic xavier-uniform weights (same shapes as nn.Linear.weight)
    enc_w = xavier_uniform(k_enc, (latent_size, input_size))   # (128, 784)
    dec_w = xavier_uniform(k_dec, (input_size, latent_size))   # (784, 128)

    we_t, wd_t = prepare_params(enc_w, dec_w)
    out = autoencoder_forward(x, we_t, wd_t)
    out = jax.block_until_ready(out)

    # Reference along the same bf16-weight / f32-accumulate compute path.
    x_flat = x.reshape(batch, -1)
    enc = jnp.dot(x_flat.astype(jnp.bfloat16), enc_w.T.astype(jnp.bfloat16),
                  preferred_element_type=jnp.float32)
    dec = jnp.dot(enc.astype(jnp.bfloat16), dec_w.T.astype(jnp.bfloat16),
                  preferred_element_type=jnp.float32)
    ref = jax.nn.sigmoid(dec)

    assert out.shape == (batch, input_size)
    assert jnp.allclose(out, ref, atol=2e-2, rtol=2e-2), \
        float(jnp.max(jnp.abs(out - ref)))

    print("KERNEL_OK")
</pallas_src>

<mosaic_0001>
module attributes {stable_mosaic.version = 11 : i64} {
  func.func @_autoencoder_kernel(%arg0: i32, %arg1: memref<8x784xf32, #tpu.memory_space<vmem>>, %arg2: memref<784x128xbf16, #tpu.memory_space<vmem>>, %arg3: memref<128x784xbf16, #tpu.memory_space<vmem>>, %arg4: memref<8x784xf32, #tpu.memory_space<vmem>>) attributes {dimension_semantics = [#tpu.dimension_semantics<parallel>], iteration_bounds = array<i64: 1>, scalar_prefetch = 0 : i64, scratch_operands = 0 : i64, tpu.core_type = #tpu.core_type<tc>, window_params = [{transform_indices = @transform_0, window_bounds = array<i64: 8, 784>}, {pipeline_mode = #tpu.pipeline_mode<synchronous>, transform_indices = @transform_1, window_bounds = array<i64: 784, 128>}, {pipeline_mode = #tpu.pipeline_mode<synchronous>, transform_indices = @transform_2, window_bounds = array<i64: 128, 784>}, {transform_indices = @transform_3, window_bounds = array<i64: 8, 784>}]} {
    %c0 = arith.constant 0 : index
    %c0_0 = arith.constant 0 : index
    %0 = vector.load %arg1[%c0, %c0_0] : memref<8x784xf32, #tpu.memory_space<vmem>>, vector<8x784xf32>
    %1 = arith.truncf %0 : vector<8x784xf32> to vector<8x784xbf16>
    %c0_1 = arith.constant 0 : index
    %c0_2 = arith.constant 0 : index
    %2 = vector.load %arg2[%c0_1, %c0_2] : memref<784x128xbf16, #tpu.memory_space<vmem>>, vector<784x128xbf16>
    %cst = arith.constant dense<0.000000e+00> : vector<8x128xf32>
    %3 = tpu.matmul %1, %2, %cst {dimension_numbers = #tpu.dot_dimension_numbers<[1], [0], [0], [1], [0, 0, 1, 1], [], []>} : vector<8x784xbf16>, vector<784x128xbf16>, vector<8x128xf32> -> vector<8x128xf32>
    %4 = arith.truncf %3 : vector<8x128xf32> to vector<8x128xbf16>
    %c0_3 = arith.constant 0 : index
    %c0_4 = arith.constant 0 : index
    %5 = vector.load %arg3[%c0_3, %c0_4] : memref<128x784xbf16, #tpu.memory_space<vmem>>, vector<128x784xbf16>
    %cst_5 = arith.constant dense<0.000000e+00> : vector<8x784xf32>
    %6 = tpu.matmul %4, %5, %cst_5 {dimension_numbers = #tpu.dot_dimension_numbers<[1], [0], [0], [1], [0, 0, 1, 1], [], []>} : vector<8x128xbf16>, vector<128x784xbf16>, vector<8x784xf32> -> vector<8x784xf32>
    %cst_6 = arith.constant 0.000000e+00 : f32
    %7 = vector.broadcast %cst_6 : f32 to vector<8x784xf32>
    %8 = arith.subf %7, %6 : vector<8x784xf32>
    %9 = math.exp %8 : vector<8x784xf32>
    %cst_7 = arith.constant 1.000000e+00 : f32
    %10 = vector.broadcast %cst_7 : f32 to vector<8x784xf32>
    %11 = arith.addf %10, %9 : vector<8x784xf32>
    %12 = tpu.reciprocal %11 {approx = true} : vector<8x784xf32> -> vector<8x784xf32>
    %c0_8 = arith.constant 0 : index
    %c0_9 = arith.constant 0 : index
    %13 = vector.load %arg4[%c0_8, %c0_9] : memref<8x784xf32, #tpu.memory_space<vmem>>, vector<8x784xf32>
    tpu.vector_store %arg4[%c0_8, %c0_9], %12 {strides = array<i32>} : memref<8x784xf32, #tpu.memory_space<vmem>>, vector<8x784xf32>,
    return
  }
  func.func @transform_0(%arg0: i32) -> (i32, i32) {
    %c0_i32 = arith.constant 0 : i32
    %c0_i32_0 = arith.constant 0 : i32
    return %arg0, %c0_i32 : i32, i32
  }
  func.func @transform_1(%arg0: i32) -> (i32, i32) {
    %c0_i32 = arith.constant 0 : i32
    %c0_i32_0 = arith.constant 0 : i32
    %c0_i32_1 = arith.constant 0 : i32
    return %c0_i32, %c0_i32_0 : i32, i32
  }
  func.func @transform_2(%arg0: i32) -> (i32, i32) {
    %c0_i32 = arith.constant 0 : i32
    %c0_i32_0 = arith.constant 0 : i32
    %c0_i32_1 = arith.constant 0 : i32
    return %c0_i32, %c0_i32_0 : i32, i32
  }
  func.func @transform_3(%arg0: i32) -> (i32, i32) {
    %c0_i32 = arith.constant 0 : i32
    %c0_i32_0 = arith.constant 0 : i32
    return %arg0, %c0_i32 : i32, i32
  }
}

</mosaic_0001>

<llo_original>
// kernel: autoencoder_forward.1
$region0: #{autoencoder_forward.1}
  #allocation0 [shape = 'u32[]', space=smem, size = 0x4, offset = 0x4, fixed_abs, tag = 'smem constant byte address 0x4 - core index']
  #allocation1 [shape = 'u32[144,128]{1,0:T(1,128)}', space=vmem, size = 0x12000, scoped, tag = 'internal scratch']
  %s0 = inlined_call_operand.vmem [shape: f32[8,784], index: 0, kind: input, shape index: {}]
  %s1 = inlined_call_operand.vmem [shape: bf16[784,128], index: 1, kind: input, shape index: {}]
  %s2 = inlined_call_operand.vmem [shape: bf16[128,784], index: 2, kind: input, shape index: {}]
  %s3 = inlined_call_operand.hbm [shape: f32[8,784], index: 3, kind: output, shape index: {}]
  %s4 = sld [smem:[#allocation0]]
  $region22: #{autoencoder_forward.1} parent=0
    _
  %s6 = ssub.s32 1, %s4
  %s7 = scalar_select 0, %s6, %s4
  $region1: #{autoencoder_forward.1} parent=0
    #allocation2 [shape = 'u8[28672]{0}', space=vmem, size = 0x7000, scoped, tag = 'output window, operand 0, single buffered']
    #allocation3 [shape = 's32[1]{0}', space=sflag, size = 0x4, scoped, tag = 'scoped memory for autoencoder_forward.1']
    %8 = vsyncpa [#allocation3], 0
    // Predicated region
    $region2: #{autoencoder_forward.1} parent=1 // pred_check
      _
    $region3: #{autoencoder_forward.1} parent=1 // pred_check_branch
      %10 = sbr.rel (0) target = $region5
    $region4: #{autoencoder_forward.1} parent=1 // pred_region
      _
    $region5: #{autoencoder_forward.1} parent=1 // pred_fallthru
      _
    // Predicated region
    $region6: #{autoencoder_forward.1} parent=1 // pred_check
      _
    $region7: #{autoencoder_forward.1} parent=1 // pred_check_branch
      %12 = sbr.rel (0) target = $region9
    $region8: #{autoencoder_forward.1} parent=1 // pred_region
      _
    $region9: #{autoencoder_forward.1} parent=1 // pred_fallthru
      _
    // Predicated region
    $region10: #{autoencoder_forward.1} parent=1 // pred_check
      _
    $region11: #{autoencoder_forward.1} parent=1 // pred_check_branch
      %14 = sbr.rel (0) target = $region13
    $region12: #{autoencoder_forward.1} parent=1 // pred_region
      _
    $region13: #{autoencoder_forward.1} parent=1 // pred_fallthru
      _
    %v16 = vld [vmem:[%s0] sm:$0xff]
    %v17 = vld [vmem:[%s0 + $0x8] sm:$0xff]
    %v18 = vld [vmem:[%s0 + $0x10] sm:$0xff]
    %v19 = vld [vmem:[%s0 + $0x18] sm:$0xff]
    %v20 = vld [vmem:[%s0 + $0x20] sm:$0xff]
    %v21 = vld [vmem:[%s0 + $0x28] sm:$0xff]
    %v22 = vld [vmem:[%s0 + $0x30] sm:$0xff]
    %v23 = vpack.c.bf16 %v16, %v16
    %v24 = vpack.c.bf16 %v17, %v17
    %v25 = vpack.c.bf16 %v18, %v18
    %v26 = vpack.c.bf16 %v19, %v19
    %v27 = vpack.c.bf16 %v20, %v20
    %v28 = vpack.c.bf16 %v21, %v21
    %v29 = vpack.c.bf16 %v22, %v22
    %v30 = vld [vmem:[%s1] sm:$0xf]
    %v31 = vld [vmem:[%s1 + $0x4] sm:$0xf]
    %v32 = vld [vmem:[%s1 + $0x8] sm:$0xf]
    %v33 = vld [vmem:[%s1 + $0xc] sm:$0xf]
    %v34 = vld [vmem:[%s1 + $0x10] sm:$0xf]
    %v35 = vld [vmem:[%s1 + $0x14] sm:$0xf]
    %v36 = vld [vmem:[%s1 + $0x18] sm:$0xf]
    %v37 = vld [vmem:[%s1 + $0x1c] sm:$0xf]
    %v38 = vld [vmem:[%s1 + $0x20] sm:$0xf]
    %v39 = vld [vmem:[%s1 + $0x24] sm:$0xf]
    %v40 = vld [vmem:[%s1 + $0x28] sm:$0xf]
    %v41 = vld [vmem:[%s1 + $0x2c] sm:$0xf]
    %v42 = vld [vmem:[%s1 + $0x30] sm:$0xf]
    %v43 = vld [vmem:[%s1 + $0x34] sm:$0xf]
    %v44 = vld [vmem:[%s1 + $0x38] sm:$0xf]
    %v45 = vld [vmem:[%s1 + $0x3c] sm:$0xf]
    %v46 = vld [vmem:[%s1 + $0x40] sm:$0xf]
    %v47 = vld [vmem:[%s1 + $0x44] sm:$0xf]
    %v48 = vld [vmem:[%s1 + $0x48] sm:$0xf]
    %v49 = vld [vmem:[%s1 + $0x4c] sm:$0xf]
    %v50 = vld [vmem:[%s1 + $0x50] sm:$0xf]
    %v51 = vld [vmem:[%s1 + $0x54] sm:$0xf]
    %v52 = vld [vmem:[%s1 + $0x58] sm:$0xf]
    %v53 = vld [vmem:[%s1 + $0x5c] sm:$0xf]
    %v54 = vld [vmem:[%s1 + $0x60] sm:$0xf]
    %v55 = vld [vmem:[%s1 + $0x64] sm:$0xf]
    %v56 = vld [vmem:[%s1 + $0x68] sm:$0xf]
    %v57 = vld [vmem:[%s1 + $0x6c] sm:$0xf]
    %v58 = vld [vmem:[%s1 + $0x70] sm:$0xf]
    %v59 = vld [vmem:[%s1 + $0x74] sm:$0xf]
    %v60 = vld [vmem:[%s1 + $0x78] sm:$0xf]
    %v61 = vld [vmem:[%s1 + $0x7c] sm:$0xf]
    %v62 = vld [vmem:[%s1 + $0x80] sm:$0xf]
    %v63 = vld [vmem:[%s1 + $0x84] sm:$0xf]
    %v64 = vld [vmem:[%s1 + $0x88] sm:$0xf]
    %v65 = vld [vmem:[%s1 + $0x8c] sm:$0xf]
    %v66 = vld [vmem:[%s1 + $0x90] sm:$0xf]
    %v67 = vld [vmem:[%s1 + $0x94] sm:$0xf]
    %v68 = vld [vmem:[%s1 + $0x98] sm:$0xf]
    %v69 = vld [vmem:[%s1 + $0x9c] sm:$0xf]
    %v70 = vld [vmem:[%s1 + $0xa0] sm:$0xf]
    %v71 = vld [vmem:[%s1 + $0xa4] sm:$0xf]
    %v72 = vld [vmem:[%s1 + $0xa8] sm:$0xf]
    %v73 = vld [vmem:[%s1 + $0xac] sm:$0xf]
    %v74 = vld [vmem:[%s1 + $0xb0] sm:$0xf]
    %v75 = vld [vmem:[%s1 + $0xb4] sm:$0xf]
    %v76 = vld [vmem:[%s1 + $0xb8] sm:$0xf]
    %v77 = vld [vmem:[%s1 + $0xbc] sm:$0xf]
    %v78 = vld [vmem:[%s1 + $0xc0] sm:$0xf]
    %v79 = vld [vmem:[%s1 + $0xc4] sm:$0xf]
    %v80 = vld [vmem:[%s1 + $0xc8] sm:$0xf]
    %v81 = vld [vmem:[%s1 + $0xcc] sm:$0xf]
    %v82 = vld [vmem:[%s1 + $0xd0] sm:$0xf]
    %v83 = vld [vmem:[%s1 + $0xd4] sm:$0xf]
    %v84 = vld [vmem:[%s1 + $0xd8] sm:$0xf]
    %v85 = vld [vmem:[%s1 + $0xdc] sm:$0xf]
    %v86 = vld [vmem:[%s1 + $0xe0] sm:$0xf]
    %v87 = vld [vmem:[%s1 + $0xe4] sm:$0xf]
    %v88 = vld [vmem:[%s1 + $0xe8] sm:$0xf]
    %v89 = vld [vmem:[%s1 + $0xec] sm:$0xf]
    %v90 = vld [vmem:[%s1 + $0xf0] sm:$0xf]
    %v91 = vld [vmem:[%s1 + $0xf4] sm:$0xf]
    %v92 = vld [vmem:[%s1 + $0xf8] sm:$0xf]
    %v93 = vld [vmem:[%s1 + $0xfc] sm:$0xf]
    %v94 = vld [vmem:[%s1 + $0x100] sm:$0xf]
    %v95 = vld [vmem:[%s1 + $0x104] sm:$0xf]
    %v96 = vld [vmem:[%s1 + $0x108] sm:$0xf]
    %v97 = vld [vmem:[%s1 + $0x10c] sm:$0xf]
    %v98 = vld [vmem:[%s1 + $0x110] sm:$0xf]
    %v99 = vld [vmem:[%s1 + $0x114] sm:$0xf]
    %v100 = vld [vmem:[%s1 + $0x118] sm:$0xf]
    %v101 = vld [vmem:[%s1 + $0x11c] sm:$0xf]
    %v102 = vld [vmem:[%s1 + $0x120] sm:$0xf]
    %v103 = vld [vmem:[%s1 + $0x124] sm:$0xf]
    %v104 = vld [vmem:[%s1 + $0x128] sm:$0xf]
    %v105 = vld [vmem:[%s1 + $0x12c] sm:$0xf]
    %v106 = vld [vmem:[%s1 + $0x130] sm:$0xf]
    %v107 = vld [vmem:[%s1 + $0x134] sm:$0xf]
    %v108 = vld [vmem:[%s1 + $0x138] sm:$0xf]
    %v109 = vld [vmem:[%s1 + $0x13c] sm:$0xf]
    %v110 = vld [vmem:[%s1 + $0x140] sm:$0xf]
    %v111 = vld [vmem:[%s1 + $0x144] sm:$0xf]
    %v112 = vld [vmem:[%s1 + $0x148] sm:$0xf]
    %v113 = vld [vmem:[%s1 + $0x14c] sm:$0xf]
    %v114 = vld [vmem:[%s1 + $0x150] sm:$0xf]
    %v115 = vld [vmem:[%s1 + $0x154] sm:$0xf]
    %v116 = vld [vmem:[%s1 + $0x158] sm:$0xf]
    %v117 = vld [vmem:[%s1 + $0x15c] sm:$0xf]
    %v118 = vld [vmem:[%s1 + $0x160] sm:$0xf]
    %v119 = vld [vmem:[%s1 + $0x164] sm:$0xf]
    %v120 = vld [vmem:[%s1 + $0x168] sm:$0xf]
    %v121 = vld [vmem:[%s1 + $0x16c] sm:$0xf]
    %v122 = vld [vmem:[%s1 + $0x170] sm:$0xf]
    %v123 = vld [vmem:[%s1 + $0x174] sm:$0xf]
    %v124 = vld [vmem:[%s1 + $0x178] sm:$0xf]
    %v125 = vld [vmem:[%s1 + $0x17c] sm:$0xf]
    %v126 = vld [vmem:[%s1 + $0x180] sm:$0xf]
    %v127 = vld [vmem:[%s1 + $0x184] sm:$0xf]
    %v226 = vunpack.c.l.b16 %v30
    %v227 = vunpack.c.l.b16 %v31
    %v228 = vunpack.c.l.b16 %v32
    %v229 = vunpack.c.l.b16 %v33
    %v230 = vunpack.c.l.b16 %v34
    %v231 = vunpack.c.l.b16 %v35
    %v232 = vunpack.c.l.b16 %v36
    %v233 = vunpack.c.l.b16 %v37
    %v234 = vunpack.c.l.b16 %v38
    %v235 = vunpack.c.l.b16 %v39
    %v236 = vunpack.c.l.b16 %v40
    %v237 = vunpack.c.l.b16 %v41
    %v238 = vunpack.c.l.b16 %v42
    %v239 = vunpack.c.l.b16 %v43
    %v240 = vunpack.c.l.b16 %v44
    %v241 = vunpack.c.l.b16 %v45
    %v242 = vunpack.c.l.b16 %v46
    %v243 = vunpack.c.l.b16 %v47
    %v244 = vunpack.c.l.b16 %v48
    %v245 = vunpack.c.l.b16 %v49
    %v246 = vunpack.c.l.b16 %v50
    %v247 = vunpack.c.l.b16 %v51
    %v248 = vunpack.c.l.b16 %v52
    %v249 = vunpack.c.l.b16 %v53
    %v250 = vunpack.c.l.b16 %v54
    %v251 = vunpack.c.l.b16 %v55
    %v252 = vunpack.c.l.b16 %v56
    %v253 = vunpack.c.l.b16 %v57
    %v254 = vunpack.c.l.b16 %v58
    %v255 = vunpack.c.l.b16 %v59
    %v256 = vunpack.c.l.b16 %v60
    %v257 = vunpack.c.l.b16 %v61
    %v258 = vunpack.c.l.b16 %v62
    %v259 = vunpack.c.l.b16 %v63
    %v260 = vunpack.c.l.b16 %v64
    %v261 = vunpack.c.l.b16 %v65
    %v262 = vunpack.c.l.b16 %v66
    %v263 = vunpack.c.l.b16 %v67
    %v264 = vunpack.c.l.b16 %v68
    %v265 = vunpack.c.l.b16 %v69
    %v266 = vunpack.c.l.b16 %v70
    %v267 = vunpack.c.l.b16 %v71
    %v268 = vunpack.c.l.b16 %v72
    %v269 = vunpack.c.l.b16 %v73
    %v270 = vunpack.c.l.b16 %v74
    %v271 = vunpack.c.l.b16 %v75
    %v272 = vunpack.c.l.b16 %v76
    %v273 = vunpack.c.l.b16 %v77
    %v274 = vunpack.c.l.b16 %v78
    %v275 = vunpack.c.l.b16 %v79
    %v276 = vunpack.c.l.b16 %v80
    %v277 = vunpack.c.l.b16 %v81
    %v278 = vunpack.c.l.b16 %v82
    %v279 = vunpack.c.l.b16 %v83
    %v280 = vunpack.c.l.b16 %v84
    %v281 = vunpack.c.l.b16 %v85
    %v282 = vunpack.c.l.b16 %v86
    %v283 = vunpack.c.l.b16 %v87
    %v284 = vunpack.c.l.b16 %v88
    %v285 = vunpack.c.l.b16 %v89
    %v286 = vunpack.c.l.b16 %v90
    %v287 = vunpack.c.l.b16 %v91
    %v288 = vunpack.c.l.b16 %v92
    %v289 = vunpack.c.l.b16 %v93
    %v290 = vunpack.c.l.b16 %v94
    %v291 = vunpack.c.l.b16 %v95
    %v292 = vunpack.c.l.b16 %v96
    %v293 = vunpack.c.l.b16 %v97
    %v294 = vunpack.c.l.b16 %v98
    %v295 = vunpack.c.l.b16 %v99
    %v296 = vunpack.c.l.b16 %v100
    %v297 = vunpack.c.l.b16 %v101
    %v298 = vunpack.c.l.b16 %v102
    %v299 = vunpack.c.l.b16 %v103
    %v300 = vunpack.c.l.b16 %v104
    %v301 = vunpack.c.l.b16 %v105
    %v302 = vunpack.c.l.b16 %v106
    %v303 = vunpack.c.l.b16 %v107
    %v304 = vunpack.c.l.b16 %v108
    %v305 = vunpack.c.l.b16 %v109
    %v306 = vunpack.c.l.b16 %v110
    %v307 = vunpack.c.l.b16 %v111
    %v308 = vunpack.c.l.b16 %v112
    %v309 = vunpack.c.l.b16 %v113
    %v310 = vunpack.c.l.b16 %v114
    %v311 = vunpack.c.l.b16 %v115
    %v312 = vunpack.c.l.b16 %v116
    %v313 = vunpack.c.l.b16 %v117
    %v314 = vunpack.c.l.b16 %v118
    %v315 = vunpack.c.l.b16 %v119
    %v316 = vunpack.c.l.b16 %v120
    %v317 = vunpack.c.l.b16 %v121
    %v318 = vunpack.c.l.b16 %v122
    %v319 = vunpack.c.l.b16 %v123
    %v320 = vunpack.c.l.b16 %v124
    %v321 = vunpack.c.l.b16 %v125
    %v322 = vunpack.c.l.b16 %v126
    %v323 = vunpack.c.l.b16 %v127
    %v324 = vpack.c.b16 %v227, %v226
    %v325 = vpack.c.b16 %v229, %v228
    %v326 = vpack.c.b16 %v231, %v230
    %v327 = vpack.c.b16 %v233, %v232
    %v328 = vpack.c.b16 %v235, %v234
    %v329 = vpack.c.b16 %v237, %v236
    %v330 = vpack.c.b16 %v239, %v238
    %v331 = vpack.c.b16 %v241, %v240
    %v332 = vpack.c.b16 %v243, %v242
    %v333 = vpack.c.b16 %v245, %v244
    %v334 = vpack.c.b16 %v247, %v246
    %v335 = vpack.c.b16 %v249, %v248
    %v336 = vpack.c.b16 %v251, %v250
    %v337 = vpack.c.b16 %v253, %v252
    %v338 = vpack.c.b16 %v255, %v254
    %v339 = vpack.c.b16 %v257, %v256
    %v340 = vpack.c.b16 %v259, %v258
    %v341 = vpack.c.b16 %v261, %v260
    %v342 = vpack.c.b16 %v263, %v262
    %v343 = vpack.c.b16 %v265, %v264
    %v344 = vpack.c.b16 %v267, %v266
    %v345 = vpack.c.b16 %v269, %v268
    %v346 = vpack.c.b16 %v271, %v270
    %v347 = vpack.c.b16 %v273, %v272
    %v348 = vpack.c.b16 %v275, %v274
    %v349 = vpack.c.b16 %v277, %v276
    %v350 = vpack.c.b16 %v279, %v278
    %v351 = vpack.c.b16 %v281, %v280
    %v352 = vpack.c.b16 %v283, %v282
    %v353 = vpack.c.b16 %v285, %v284
    %v354 = vpack.c.b16 %v287, %v286
    %v355 = vpack.c.b16 %v289, %v288
    %v356 = vpack.c.b16 %v291, %v290
    %v357 = vpack.c.b16 %v293, %v292
    %v358 = vpack.c.b16 %v295, %v294
    %v359 = vpack.c.b16 %v297, %v296
    %v360 = vpack.c.b16 %v299, %v298
    %v361 = vpack.c.b16 %v301, %v300
    %v362 = vpack.c.b16 %v303, %v302
    %v363 = vpack.c.b16 %v305, %v304
    %v364 = vpack.c.b16 %v307, %v306
    %v365 = vpack.c.b16 %v309, %v308
    %v366 = vpack.c.b16 %v311, %v310
    %v367 = vpack.c.b16 %v313, %v312
    %v368 = vpack.c.b16 %v315, %v314
    %v369 = vpack.c.b16 %v317, %v316
    %v370 = vpack.c.b16 %v319, %v318
    %v371 = vpack.c.b16 %v321, %v320
    %v372 = vpack.c.b16 %v323, %v322
    %vm422 = vcmask 130048
    %v424 = vsel %vm422, %v29, 0
    %426 = vmatprep.subr.bf16.mxu0 0
    %427 = vmatpush1.bf16.msra.mxu0 %v324
    %428 = vmatprep.subr.bf16.mxu0 0
    %429 = vmatpush1.bf16.msra.mxu0 %v325
    %430 = vmatprep.subr.bf16.mxu0 0
    %431 = vmatpush1.bf16.msra.mxu0 %v326
    %432 = vmatprep.subr.bf16.mxu0 0
    %433 = vmatpush1.bf16.msra.mxu0 %v327
    %434 = vmatprep.subr.bf16.mxu0 0
    %435 = vmatpush1.bf16.msra.mxu0 %v328
    %436 = vmatprep.subr.bf16.mxu0 0
    %437 = vmatpush1.bf16.msra.mxu0 %v329
    %438 = vmatprep.subr.bf16.mxu0 0
    %439 = vmatpush1.bf16.msra.mxu0 %v330
    %440 = vmatprep.subr.bf16.mxu0 0
    %441 = vmatpush1.bf16.msra.mxu0 %v331
    %442 = vmatprep.subr.bf16.mxu0 0
    %443 = vmatpush1.bf16.msra.mxu0 %v332
    %444 = vmatprep.subr.bf16.mxu0 0
    %445 = vmatpush1.bf16.msra.mxu0 %v333
    %446 = vmatprep.subr.bf16.mxu0 0
    %447 = vmatpush1.bf16.msra.mxu0 %v334
    %448 = vmatprep.subr.bf16.mxu0 0
    %449 = vmatpush1.bf16.msra.mxu0 %v335
    %450 = vmatprep.subr.bf16.mxu0 0
    %451 = vmatpush1.bf16.msra.mxu0 %v336
    %452 = vmatprep.subr.bf16.mxu0 0
    %453 = vmatpush1.bf16.msra.mxu0 %v337
    %454 = vmatprep.subr.bf16.mxu0 0
    %455 = vmatpush1.bf16.msra.mxu0 %v338
    %456 = vmatprep.subr.bf16.mxu0 0
    %457 = vmatpush1.bf16.msra.mxu0 %v339
    %458 = vmatprep.mubr.bf16.mxu0 %v24
    %459 = vmatmul.mubr.bf16.gmra.mrb[0].mxu0 %v23
    %v460 = vpop.f32.mrb[0].mxu0
    %v461 = vadd.f32 0.0, %v460
    %v462 = vpop.f32.mrb[0].mxu0
    %v463 = vpop.f32.mrb[0].mxu0
    %v464 = vpop.f32.mrb[0].mxu0
    %465 = vdwg.mxu0
    %466 = vmatprep.subr.bf16.mxu0 0
    %467 = vmatpush1.bf16.msra.mxu0 %v340
    %468 = vmatprep.subr.bf16.mxu0 0
    %469 = vmatpush1.bf16.msra.mxu0 %v341
    %470 = vmatprep.subr.bf16.mxu0 0
    %471 = vmatpush1.bf16.msra.mxu0 %v342
    %472 = vmatprep.subr.bf16.mxu0 0
    %473 = vmatpush1.bf16.msra.mxu0 %v343
    %474 = vmatprep.subr.bf16.mxu0 0
    %475 = vmatpush1.bf16.msra.mxu0 %v344
    %476 = vmatprep.subr.bf16.mxu0 0
    %477 = vmatpush1.bf16.msra.mxu0 %v345
    %478 = vmatprep.subr.bf16.mxu0 0
    %479 = vmatpush1.bf16.msra.mxu0 %v346
    %480 = vmatprep.subr.bf16.mxu0 0
    %481 = vmatpush1.bf16.msra.mxu0 %v347
    %482 = vmatprep.subr.bf16.mxu0 0
    %483 = vmatpush1.bf16.msra.mxu0 %v348
    %484 = vmatprep.subr.bf16.mxu0 0
    %485 = vmatpush1.bf16.msra.mxu0 %v349
    %486 = vmatprep.subr.bf16.mxu0 0
    %487 = vmatpush1.bf16.msra.mxu0 %v350
    %488 = vmatprep.subr.bf16.mxu0 0
    %489 = vmatpush1.bf16.msra.mxu0 %v351
    %490 = vmatprep.subr.bf16.mxu0 0
    %491 = vmatpush1.bf16.msra.mxu0 %v352
    %492 = vmatprep.subr.bf16.mxu0 0
    %493 = vmatpush1.bf16.msra.mxu0 %v353
    %494 = vmatprep.subr.bf16.mxu0 0
    %495 = vmatpush1.bf16.msra.mxu0 %v354
    %496 = vmatprep.subr.bf16.mxu0 0
    %497 = vmatpush1.bf16.msra.mxu0 %v355
    %498 = vmatprep.mubr.bf16.mxu0 %v26
    %499 = vmatmul.mubr.bf16.gmra.mrb[0].mxu0 %v25
    %v500 = vpop.f32.mrb[0].mxu0
    %v501 = vadd.f32 %v461, %v500
    %v502 = vpop.f32.mrb[0].mxu0
    %v503 = vpop.f32.mrb[0].mxu0
    %v504 = vpop.f32.mrb[0].mxu0
    %505 = vdwg.mxu0
    %506 = vmatprep.subr.bf16.mxu0 0
    %507 = vmatpush1.bf16.msra.mxu0 %v356
    %508 = vmatprep.subr.bf16.mxu0 0
    %509 = vmatpush1.bf16.msra.mxu0 %v357
    %510 = vmatprep.subr.bf16.mxu0 0
    %511 = vmatpush1.bf16.msra.mxu0 %v358
    %512 = vmatprep.subr.bf16.mxu0 0
    %513 = vmatpush1.bf16.msra.mxu0 %v359
    %514 = vmatprep.subr.bf16.mxu0 0
    %515 = vmatpush1.bf16.msra.mxu0 %v360
    %516 = vmatprep.subr.bf16.mxu0 0
    %517 = vmatpush1.bf16.msra.mxu0 %v361
    %518 = vmatprep.subr.bf16.mxu0 0
    %519 = vmatpush1.bf16.msra.mxu0 %v362
    %520 = vmatprep.subr.bf16.mxu0 0
    %521 = vmatpush1.bf16.msra.mxu0 %v363
    %522 = vmatprep.subr.bf16.mxu0 0
    %523 = vmatpush1.bf16.msra.mxu0 %v364
    %524 = vmatprep.subr.bf16.mxu0 0
    %525 = vmatpush1.bf16.msra.mxu0 %v365
    %526 = vmatprep.subr.bf16.mxu0 0
    %527 = vmatpush1.bf16.msra.mxu0 %v366
    %528 = vmatprep.subr.bf16.mxu0 0
    %529 = vmatpush1.bf16.msra.mxu0 %v367
    %530 = vmatprep.subr.bf16.mxu0 0
    %531 = vmatpush1.bf16.msra.mxu0 %v368
    %532 = vmatprep.subr.bf16.mxu0 0
    %533 = vmatpush1.bf16.msra.mxu0 %v369
    %534 = vmatprep.subr.bf16.mxu0 0
    %535 = vmatpush1.bf16.msra.mxu0 %v370
    %536 = vmatprep.subr.bf16.mxu0 0
    %537 = vmatpush1.bf16.msra.mxu0 %v371
    %538 = vmatprep.mubr.bf16.mxu0 %v28
    %539 = vmatmul.mubr.bf16.gmra.mrb[0].mxu0 %v27
    %v540 = vpop.f32.mrb[0].mxu0
    %v541 = vadd.f32 %v501, %v540
    %v542 = vpop.f32.mrb[0].mxu0
    %v543 = vpop.f32.mrb[0].mxu0
    %v544 = vpop.f32.mrb[0].mxu0
    %545 = vdwg.mxu0
    %546 = vmatprep.subr.bf16.mxu0 0
    %547 = vmatpush1.bf16.msra.mxu0 %v372
    %548 = vmatprep.subr.bf16.mxu0 0
    %549 = vmatpush1.bf16.msra.mxu0 0
    %550 = vmatprep.subr.bf16.mxu0 0
    %551 = vmatpush1.bf16.msra.mxu0 0
    %552 = vmatprep.subr.bf16.mxu0 0
    %553 = vmatpush1.bf16.msra.mxu0 0
    %554 = vmatprep.subr.bf16.mxu0 0
    %555 = vmatpush1.bf16.msra.mxu0 0
    %556 = vmatprep.subr.bf16.mxu0 0
    %557 = vmatpush1.bf16.msra.mxu0 0
    %558 = vmatprep.subr.bf16.mxu0 0
    %559 = vmatpush1.bf16.msra.mxu0 0
    %560 = vmatprep.subr.bf16.mxu0 0
    %561 = vmatpush1.bf16.msra.mxu0 0
    %562 = vmatprep.subr.bf16.mxu0 0
    %563 = vmatpush1.bf16.msra.mxu0 0
    %564 = vmatprep.subr.bf16.mxu0 0
    %565 = vmatpush1.bf16.msra.mxu0 0
    %566 = vmatprep.subr.bf16.mxu0 0
    %567 = vmatpush1.bf16.msra.mxu0 0
    %568 = vmatprep.subr.bf16.mxu0 0
    %569 = vmatpush1.bf16.msra.mxu0 0
    %570 = vmatprep.subr.bf16.mxu0 0
    %571 = vmatpush1.bf16.msra.mxu0 0
    %572 = vmatprep.subr.bf16.mxu0 0
    %573 = vmatpush1.bf16.msra.mxu0 0
    %574 = vmatprep.subr.bf16.mxu0 0
    %575 = vmatpush1.bf16.msra.mxu0 0
    %576 = vmatprep.subr.bf16.mxu0 0
    %577 = vmatpush1.bf16.msra.mxu0 0
    %578 = vmatprep.mubr.bf16.mxu0 0
    %579 = vmatmul.mubr.bf16.gmra.mrb[0].mxu0 %v424
    %v580 = vpop.f32.mrb[0].mxu0
    %v581 = vadd.f32 %v541, %v580
    %v582 = vpop.f32.mrb[0].mxu0
    %v583 = vpop.f32.mrb[0].mxu0
    %v584 = vpop.f32.mrb[0].mxu0
    %585 = vdwg.mxu0
    %v586 = vpack.c.bf16 %v581, %v581
    %v587 = vld [vmem:[%s2] sm:$0xff]
    %v588 = vld [vmem:[%s2 + $0x8] sm:$0xff]
    %v589 = vld [vmem:[%s2 + $0x10] sm:$0xff]
    %v590 = vld [vmem:[%s2 + $0x18] sm:$0xf]
    %v591 = vld [vmem:[%s2 + $0x1c] sm:$0xff]
    %v592 = vld [vmem:[%s2 + $0x24] sm:$0xff]
    %v593 = vld [vmem:[%s2 + $0x2c] sm:$0xff]
    %v594 = vld [vmem:[%s2 + $0x34] sm:$0xf]
    %v595 = vld [vmem:[%s2 + $0x38] sm:$0xff]
    %v596 = vld [vmem:[%s2 + $0x40] sm:$0xff]
    %v597 = vld [vmem:[%s2 + $0x48] sm:$0xff]
    %v598 = vld [vmem:[%s2 + $0x50] sm:$0xf]
    %v599 = vld [vmem:[%s2 + $0x54] sm:$0xff]
    %v600 = vld [vmem:[%s2 + $0x5c] sm:$0xff]
    %v601 = vld [vmem:[%s2 + $0x64] sm:$0xff]
    %v602 = vld [vmem:[%s2 + $0x6c] sm:$0xf]
    %v603 = vld [vmem:[%s2 + $0x70] sm:$0xff]
    %v604 = vld [vmem:[%s2 + $0x78] sm:$0xff]
    %v605 = vld [vmem:[%s2 + $0x80] sm:$0xff]
    %v606 = vld [vmem:[%s2 + $0x88] sm:$0xf]
    %v607 = vld [vmem:[%s2 + $0x8c] sm:$0xff]
    %v608 = vld [vmem:[%s2 + $0x94] sm:$0xff]
    %v609 = vld [vmem:[%s2 + $0x9c] sm:$0xff]
    %v610 = vld [vmem:[%s2 + $0xa4] sm:$0xf]
    %v611 = vld [vmem:[%s2 + $0xa8] sm:$0xff]
    %v612 = vld [vmem:[%s2 + $0xb0] sm:$0xff]
    %v613 = vld [vmem:[%s2 + $0xb8] sm:$0xff]
    %v614 = vld [vmem:[%s2 + $0xc0] sm:$0xf]
    %v615 = vld [vmem:[%s2 + $0xc4] sm:$0xff]
    %v616 = vld [vmem:[%s2 + $0xcc] sm:$0xff]
    %v617 = vld [vmem:[%s2 + $0xd4] sm:$0xff]
    %v618 = vld [vmem:[%s2 + $0xdc] sm:$0xf]
    %v619 = vld [vmem:[%s2 + $0xe0] sm:$0xff]
    %v620 = vld [vmem:[%s2 + $0xe8] sm:$0xff]
    %v621 = vld [vmem:[%s2 + $0xf0] sm:$0xff]
    %v622 = vld [vmem:[%s2 + $0xf8] sm:$0xf]
    %v623 = vld [vmem:[%s2 + $0xfc] sm:$0xff]
    %v624 = vld [vmem:[%s2 + $0x104] sm:$0xff]
    %v625 = vld [vmem:[%s2 + $0x10c] sm:$0xff]
    %v626 = vld [vmem:[%s2 + $0x114] sm:$0xf]
    %v627 = vld [vmem:[%s2 + $0x118] sm:$0xff]
    %v628 = vld [vmem:[%s2 + $0x120] sm:$0xff]
    %v629 = vld [vmem:[%s2 + $0x128] sm:$0xff]
    %v630 = vld [vmem:[%s2 + $0x130] sm:$0xf]
    %v631 = vld [vmem:[%s2 + $0x134] sm:$0xff]
    %v632 = vld [vmem:[%s2 + $0x13c] sm:$0xff]
    %v633 = vld [vmem:[%s2 + $0x144] sm:$0xff]
    %v634 = vld [vmem:[%s2 + $0x14c] sm:$0xf]
    %v635 = vld [vmem:[%s2 + $0x150] sm:$0xff]
    %v636 = vld [vmem:[%s2 + $0x158] sm:$0xff]
    %v637 = vld [vmem:[%s2 + $0x160] sm:$0xff]
    %v638 = vld [vmem:[%s2 + $0x168] sm:$0xf]
    %v639 = vld [vmem:[%s2 + $0x16c] sm:$0xff]
    %v640 = vld [vmem:[%s2 + $0x174] sm:$0xff]
    %v641 = vld [vmem:[%s2 + $0x17c] sm:$0xff]
    %v642 = vld [vmem:[%s2 + $0x184] sm:$0xf]
    %v643 = vld [vmem:[%s2 + $0x188] sm:$0xff]
    %v644 = vld [vmem:[%s2 + $0x190] sm:$0xff]
    %v645 = vld [vmem:[%s2 + $0x198] sm:$0xff]
    %v646 = vld [vmem:[%s2 + $0x1a0] sm:$0xf]
    %v647 = vld [vmem:[%s2 + $0x1a4] sm:$0xff]
    %v648 = vld [vmem:[%s2 + $0x1ac] sm:$0xff]
    %v649 = vld [vmem:[%s2 + $0x1b4] sm:$0xff]
    %v650 = vld [vmem:[%s2 + $0x1bc] sm:$0xf]
    %v715 = vunpack.c.l.b16 %v587
    %v716 = vunpack.c.h.b16 %v587
    %v717 = vunpack.c.l.b16 %v588
    %v718 = vunpack.c.h.b16 %v588
    %v719 = vunpack.c.l.b16 %v589
    %v720 = vunpack.c.h.b16 %v589
    %v721 = vunpack.c.l.b16 %v590
    %v722 = vunpack.c.l.b16 %v591
    %v723 = vunpack.c.h.b16 %v591
    %v724 = vunpack.c.l.b16 %v592
    %v725 = vunpack.c.h.b16 %v592
    %v726 = vunpack.c.l.b16 %v593
    %v727 = vunpack.c.h.b16 %v593
    %v728 = vunpack.c.l.b16 %v594
    %v729 = vunpack.c.l.b16 %v595
    %v730 = vunpack.c.h.b16 %v595
    %v731 = vunpack.c.l.b16 %v596
    %v732 = vunpack.c.h.b16 %v596
    %v733 = vunpack.c.l.b16 %v597
    %v734 = vunpack.c.h.b16 %v597
    %v735 = vunpack.c.l.b16 %v598
    %v736 = vunpack.c.l.b16 %v599
    %v737 = vunpack.c.h.b16 %v599
    %v738 = vunpack.c.l.b16 %v600
    %v739 = vunpack.c.h.b16 %v600
    %v740 = vunpack.c.l.b16 %v601
    %v741 = vunpack.c.h.b16 %v601
    %v742 = vunpack.c.l.b16 %v602
    %v743 = vunpack.c.l.b16 %v603
    %v744 = vunpack.c.h.b16 %v603
    %v745 = vunpack.c.l.b16 %v604
    %v746 = vunpack.c.h.b16 %v604
    %v747 = vunpack.c.l.b16 %v605
    %v748 = vunpack.c.h.b16 %v605
    %v749 = vunpack.c.l.b16 %v606
    %v750 = vunpack.c.l.b16 %v607
    %v751 = vunpack.c.h.b16 %v607
    %v752 = vunpack.c.l.b16 %v608
    %v753 = vunpack.c.h.b16 %v608
    %v754 = vunpack.c.l.b16 %v609
    %v755 = vunpack.c.h.b16 %v609
    %v756 = vunpack.c.l.b16 %v610
    %v757 = vunpack.c.l.b16 %v611
    %v758 = vunpack.c.h.b16 %v611
    %v759 = vunpack.c.l.b16 %v612
    %v760 = vunpack.c.h.b16 %v612
    %v761 = vunpack.c.l.b16 %v613
    %v762 = vunpack.c.h.b16 %v613
    %v763 = vunpack.c.l.b16 %v614
    %v764 = vunpack.c.l.b16 %v615
    %v765 = vunpack.c.h.b16 %v615
    %v766 = vunpack.c.l.b16 %v616
    %v767 = vunpack.c.h.b16 %v616
    %v768 = vunpack.c.l.b16 %v617
    %v769 = vunpack.c.h.b16 %v617
    %v770 = vunpack.c.l.b16 %v618
    %v771 = vunpack.c.l.b16 %v619
    %v772 = vunpack.c.h.b16 %v619
    %v773 = vunpack.c.l.b16 %v620
    %v774 = vunpack.c.h.b16 %v620
    %v775 = vunpack.c.l.b16 %v621
    %v776 = vunpack.c.h.b16 %v621
    %v777 = vunpack.c.l.b16 %v622
    %v778 = vunpack.c.l.b16 %v623
    %v779 = vunpack.c.h.b16 %v623
    %v780 = vunpack.c.l.b16 %v624
    %v781 = vunpack.c.h.b16 %v624
    %v782 = vunpack.c.l.b16 %v625
    %v783 = vunpack.c.h.b16 %v625
    %v784 = vunpack.c.l.b16 %v626
    %v785 = vunpack.c.l.b16 %v627
    %v786 = vunpack.c.h.b16 %v627
    %v787 = vunpack.c.l.b16 %v628
    %v788 = vunpack.c.h.b16 %v628
    %v789 = vunpack.c.l.b16 %v629
    %v790 = vunpack.c.h.b16 %v629
    %v791 = vunpack.c.l.b16 %v630
    %v792 = vunpack.c.l.b16 %v631
    %v793 = vunpack.c.h.b16 %v631
    %v794 = vunpack.c.l.b16 %v632
    %v795 = vunpack.c.h.b16 %v632
    %v796 = vunpack.c.l.b16 %v633
    %v797 = vunpack.c.h.b16 %v633
    %v798 = vunpack.c.l.b16 %v634
    %v799 = vunpack.c.l.b16 %v635
    %v800 = vunpack.c.h.b16 %v635
    %v801 = vunpack.c.l.b16 %v636
    %v802 = vunpack.c.h.b16 %v636
    %v803 = vunpack.c.l.b16 %v637
    %v804 = vunpack.c.h.b16 %v637
    %v805 = vunpack.c.l.b16 %v638
    %v806 = vunpack.c.l.b16 %v639
    %v807 = vunpack.c.h.b16 %v639
    %v808 = vunpack.c.l.b16 %v640
    %v809 = vunpack.c.h.b16 %v640
    %v810 = vunpack.c.l.b16 %v641
    %v811 = vunpack.c.h.b16 %v641
    %v812 = vunpack.c.l.b16 %v642
    %v813 = vunpack.c.l.b16 %v643
    %v814 = vunpack.c.h.b16 %v643
    %v815 = vunpack.c.l.b16 %v644
    %v816 = vunpack.c.h.b16 %v644
    %v817 = vunpack.c.l.b16 %v645
    %v818 = vunpack.c.h.b16 %v645
    %v819 = vunpack.c.l.b16 %v646
    %v820 = vunpack.c.l.b16 %v647
    %v821 = vunpack.c.h.b16 %v647
    %v822 = vunpack.c.l.b16 %v648
    %v823 = vunpack.c.h.b16 %v648
    %v824 = vunpack.c.l.b16 %v649
    %v825 = vunpack.c.h.b16 %v649
    %v826 = vunpack.c.l.b16 %v650
    %v827 = vpack.c.b16 %v722, %v715
    %v828 = vpack.c.b16 %v723, %v716
    %v829 = vpack.c.b16 %v724, %v717
    %v830 = vpack.c.b16 %v725, %v718
    %v831 = vpack.c.b16 %v726, %v719
    %v832 = vpack.c.b16 %v727, %v720
    %v833 = vpack.c.b16 %v728, %v721
    %v834 = vpack.c.b16 %v736, %v729
    %v835 = vpack.c.b16 %v737, %v730
    %v836 = vpack.c.b16 %v738, %v731
    %v837 = vpack.c.b16 %v739, %v732
    %v838 = vpack.c.b16 %v740, %v733
    %v839 = vpack.c.b16 %v741, %v734
    %v840 = vpack.c.b16 %v742, %v735
    %v841 = vpack.c.b16 %v750, %v743
    %v842 = vpack.c.b16 %v751, %v744
    %v843 = vpack.c.b16 %v752, %v745
    %v844 = vpack.c.b16 %v753, %v746
    %v845 = vpack.c.b16 %v754, %v747
    %v846 = vpack.c.b16 %v755, %v748
    %v847 = vpack.c.b16 %v756, %v749
    %v848 = vpack.c.b16 %v764, %v757
    %v849 = vpack.c.b16 %v765, %v758
    %v850 = vpack.c.b16 %v766, %v759
    %v851 = vpack.c.b16 %v767, %v760
    %v852 = vpack.c.b16 %v768, %v761
    %v853 = vpack.c.b16 %v769, %v762
    %v854 = vpack.c.b16 %v770, %v763
    %v855 = vpack.c.b16 %v778, %v771
    %v856 = vpack.c.b16 %v779, %v772
    %v857 = vpack.c.b16 %v780, %v773
    %v858 = vpack.c.b16 %v781, %v774
    %v859 = vpack.c.b16 %v782, %v775
    %v860 = vpack.c.b16 %v783, %v776
    %v861 = vpack.c.b16 %v784, %v777
    %v862 = vpack.c.b16 %v792, %v785
    %v863 = vpack.c.b16 %v793, %v786
    %v864 = vpack.c.b16 %v794, %v787
    %v865 = vpack.c.b16 %v795, %v788
    %v866 = vpack.c.b16 %v796, %v789
    %v867 = vpack.c.b16 %v797, %v790
    %v868 = vpack.c.b16 %v798, %v791
    %v869 = vpack.c.b16 %v806, %v799
    %v870 = vpack.c.b16 %v807, %v800
    %v871 = vpack.c.b16 %v808, %v801
    %v872 = vpack.c.b16 %v809, %v802
    %v873 = vpack.c.b16 %v810, %v803
    %v874 = vpack.c.b16 %v811, %v804
    %v875 = vpack.c.b16 %v812, %v805
    %v876 = vpack.c.b16 %v820, %v813
    %v877 = vpack.c.b16 %v821, %v814
    %v878 = vpack.c.b16 %v822, %v815
    %v879 = vpack.c.b16 %v823, %v816
    %v880 = vpack.c.b16 %v824, %v817
    %v881 = vpack.c.b16 %v825, %v818
    %v882 = vpack.c.b16 %v826, %v819
    %939 = vmatprep.subr.bf16.mxu0 %v828
    %940 = vmatpush1.bf16.msra.mxu0 %v827
    %941 = vmatprep.subr.bf16.mxu0 %v835
    %942 = vmatpush1.bf16.msra.mxu0 %v834
    %943 = vmatprep.subr.bf16.mxu0 %v842
    %944 = vmatpush1.bf16.msra.mxu0 %v841
    %945 = vmatprep.subr.bf16.mxu0 %v849
    %946 = vmatpush1.bf16.msra.mxu0 %v848
    %947 = vmatprep.subr.bf16.mxu0 %v856
    %948 = vmatpush1.bf16.msra.mxu0 %v855
    %949 = vmatprep.subr.bf16.mxu0 %v863
    %950 = vmatpush1.bf16.msra.mxu0 %v862
    %951 = vmatprep.subr.bf16.mxu0 %v870
    %952 = vmatpush1.bf16.msra.mxu0 %v869
    %953 = vmatprep.subr.bf16.mxu0 %v877
    %954 = vmatpush1.bf16.msra.mxu0 %v876
    %955 = vmatprep.subr.bf16.mxu0 0
    %956 = vmatpush1.bf16.msra.mxu0 0
    %957 = vmatprep.subr.bf16.mxu0 0
    %958 = vmatpush1.bf16.msra.mxu0 0
    %959 = vmatprep.subr.bf16.mxu0 0
    %960 = vmatpush1.bf16.msra.mxu0 0
    %961 = vmatprep.subr.bf16.mxu0 0
    %962 = vmatpush1.bf16.msra.mxu0 0
    %963 = vmatprep.subr.bf16.mxu0 0
    %964 = vmatpush1.bf16.msra.mxu0 0
    %965 = vmatprep.subr.bf16.mxu0 0
    %966 = vmatpush1.bf16.msra.mxu0 0
    %967 = vmatprep.subr.bf16.mxu0 0
    %968 = vmatpush1.bf16.msra.mxu0 0
    %969 = vmatprep.subr.bf16.mxu0 0
    %970 = vmatpush1.bf16.msra.mxu0 0
    %971 = vmatprep.mubr.bf16.mxu0 0
    %972 = vmatmul.mubr.bf16.gmra.mrb[0].mxu0 %v586
    %v973 = vpop.f32.mrb[0].mxu0
    %v974 = vadd.f32 0.0, %v973
    %v975 = vpop.f32.mrb[0].mxu0
    %v976 = vadd.f32 0.0, %v975
    %v977 = vpop.f32.mrb[0].mxu0
    %v978 = vpop.f32.mrb[0].mxu0
    %979 = vdwg.mxu0
    %980 = vmatprep.subr.bf16.mxu0 %v830
    %981 = vmatpush1.bf16.msra.mxu0 %v829
    %982 = vmatprep.subr.bf16.mxu0 %v837
    %983 = vmatpush1.bf16.msra.mxu0 %v836
    %984 = vmatprep.subr.bf16.mxu0 %v844
    %985 = vmatpush1.bf16.msra.mxu0 %v843
    %986 = vmatprep.subr.bf16.mxu0 %v851
    %987 = vmatpush1.bf16.msra.mxu0 %v850
    %988 = vmatprep.subr.bf16.mxu0 %v858
    %989 = vmatpush1.bf16.msra.mxu0 %v857
    %990 = vmatprep.subr.bf16.mxu0 %v865
    %991 = vmatpush1.bf16.msra.mxu0 %v864
    %992 = vmatprep.subr.bf16.mxu0 %v872
    %993 = vmatpush1.bf16.msra.mxu0 %v871
    %994 = vmatprep.subr.bf16.mxu0 %v879
    %995 = vmatpush1.bf16.msra.mxu0 %v878
    %996 = vmatprep.subr.bf16.mxu0 0
    %997 = vmatpush1.bf16.msra.mxu0 0
    %998 = vmatprep.subr.bf16.mxu0 0
    %999 = vmatpush1.bf16.msra.mxu0 0
    %1000 = vmatprep.subr.bf16.mxu0 0
    %1001 = vmatpush1.bf16.msra.mxu0 0
    %1002 = vmatprep.subr.bf16.mxu0 0
    %1003 = vmatpush1.bf16.msra.mxu0 0
    %1004 = vmatprep.subr.bf16.mxu0 0
    %1005 = vmatpush1.bf16.msra.mxu0 0
    %1006 = vmatprep.subr.bf16.mxu0 0
    %1007 = vmatpush1.bf16.msra.mxu0 0
    %1008 = vmatprep.subr.bf16.mxu0 0
    %1009 = vmatpush1.bf16.msra.mxu0 0
    %1010 = vmatprep.subr.bf16.mxu0 0
    %1011 = vmatpush1.bf16.msra.mxu0 0
    %1012 = vmatprep.mubr.bf16.mxu0 0
    %1013 = vmatmul.mubr.bf16.gmra.mrb[0].mxu0 %v586
    %v1014 = vpop.f32.mrb[0].mxu0
    %v1015 = vadd.f32 0.0, %v1014
    %v1016 = vpop.f32.mrb[0].mxu0
    %v1017 = vadd.f32 0.0, %v1016
    %v1018 = vpop.f32.mrb[0].mxu0
    %v1019 = vpop.f32.mrb[0].mxu0
    %1020 = vdwg.mxu0
    %1021 = vmatprep.subr.bf16.mxu0 %v832
    %1022 = vmatpush1.bf16.msra.mxu0 %v831
    %1023 = vmatprep.subr.bf16.mxu0 %v839
    %1024 = vmatpush1.bf16.msra.mxu0 %v838
    %1025 = vmatprep.subr.bf16.mxu0 %v846
    %1026 = vmatpush1.bf16.msra.mxu0 %v845
    %1027 = vmatprep.subr.bf16.mxu0 %v853
    %1028 = vmatpush1.bf16.msra.mxu0 %v852
    %1029 = vmatprep.subr.bf16.mxu0 %v860
    %1030 = vmatpush1.bf16.msra.mxu0 %v859
    %1031 = vmatprep.subr.bf16.mxu0 %v867
    %1032 = vmatpush1.bf16.msra.mxu0 %v866
    %1033 = vmatprep.subr.bf16.mxu0 %v874
    %1034 = vmatpush1.bf16.msra.mxu0 %v873
    %1035 = vmatprep.subr.bf16.mxu0 %v881
    %1036 = vmatpush1.bf16.msra.mxu0 %v880
    %1037 = vmatprep.subr.bf16.mxu0 0
    %1038 = vmatpush1.bf16.msra.mxu0 0
    %1039 = vmatprep.subr.bf16.mxu0 0
    %1040 = vmatpush1.bf16.msra.mxu0 0
    %1041 = vmatprep.subr.bf16.mxu0 0
    %1042 = vmatpush1.bf16.msra.mxu0 0
    %1043 = vmatprep.subr.bf16.mxu0 0
    %1044 = vmatpush1.bf16.msra.mxu0 0
    %1045 = vmatprep.subr.bf16.mxu0 0
    %1046 = vmatpush1.bf16.msra.mxu0 0
    %1047 = vmatprep.subr.bf16.mxu0 0
    %1048 = vmatpush1.bf16.msra.mxu0 0
    %1049 = vmatprep.subr.bf16.mxu0 0
    %1050 = vmatpush1.bf16.msra.mxu0 0
    %1051 = vmatprep.subr.bf16.mxu0 0
    %1052 = vmatpush1.bf16.msra.mxu0 0
    %1053 = vmatprep.mubr.bf16.mxu0 0
    %1054 = vmatmul.mubr.bf16.gmra.mrb[0].mxu0 %v586
    %v1055 = vpop.f32.mrb[0].mxu0
    %v1056 = vadd.f32 0.0, %v1055
    %v1057 = vpop.f32.mrb[0].mxu0
    %v1058 = vadd.f32 0.0, %v1057
    %v1059 = vpop.f32.mrb[0].mxu0
    %v1060 = vpop.f32.mrb[0].mxu0
    %1061 = vdwg.mxu0
    %1062 = vmatprep.subr.bf16.mxu0 0
    %1063 = vmatpush1.bf16.msra.mxu0 %v833
    %1064 = vmatprep.subr.bf16.mxu0 0
    %1065 = vmatpush1.bf16.msra.mxu0 %v840
    %1066 = vmatprep.subr.bf16.mxu0 0
    %1067 = vmatpush1.bf16.msra.mxu0 %v847
    %1068 = vmatprep.subr.bf16.mxu0 0
    %1069 = vmatpush1.bf16.msra.mxu0 %v854
    %1070 = vmatprep.subr.bf16.mxu0 0
    %1071 = vmatpush1.bf16.msra.mxu0 %v861
    %1072 = vmatprep.subr.bf16.mxu0 0
    %1073 = vmatpush1.bf16.msra.mxu0 %v868
    %1074 = vmatprep.subr.bf16.mxu0 0
    %1075 = vmatpush1.bf16.msra.mxu0 %v875
    %1076 = vmatprep.subr.bf16.mxu0 0
    %1077 = vmatpush1.bf16.msra.mxu0 %v882
    %1078 = vmatprep.subr.bf16.mxu0 0
    %1079 = vmatpush1.bf16.msra.mxu0 0
    %1080 = vmatprep.subr.bf16.mxu0 0
    %1081 = vmatpush1.bf16.msra.mxu0 0
    %1082 = vmatprep.subr.bf16.mxu0 0
    %1083 = vmatpush1.bf16.msra.mxu0 0
    %1084 = vmatprep.subr.bf16.mxu0 0
    %1085 = vmatpush1.bf16.msra.mxu0 0
    %1086 = vmatprep.subr.bf16.mxu0 0
    %1087 = vmatpush1.bf16.msra.mxu0 0
    %1088 = vmatprep.subr.bf16.mxu0 0
    %1089 = vmatpush1.bf16.msra.mxu0 0
    %1090 = vmatprep.subr.bf16.mxu0 0
    %1091 = vmatpush1.bf16.msra.mxu0 0
    %1092 = vmatprep.subr.bf16.mxu0 0
    %1093 = vmatpush1.bf16.msra.mxu0 0
    %1094 = vmatprep.mubr.bf16.mxu0 0
    %1095 = vmatmul.mubr.bf16.gmra.mrb[0].mxu0 %v586
    %v1096 = vpop.f32.mrb[0].mxu0
    %v1097 = vadd.f32 0.0, %v1096
    %v1098 = vpop.f32.mrb[0].mxu0
    %v1099 = vpop.f32.mrb[0].mxu0
    %v1100 = vpop.f32.mrb[0].mxu0
    %1101 = vdwg.mxu0
    %v1102 = vsub.f32 0.0, %v974
    %v1103 = vsub.f32 0.0, %v976
    %v1104 = vsub.f32 0.0, %v1015
    %v1105 = vsub.f32 0.0, %v1017
    %v1106 = vsub.f32 0.0, %v1056
    %v1107 = vsub.f32 0.0, %v1058
    %v1108 = vsub.f32 0.0, %v1097
    %v1109 = vmul.f32 %v1102, 1.442695
    %v1110 = vpow.pop %v1109
    %v1111 = vmul.f32 %v1103, 1.442695
    %v1112 = vpow.pop %v1111
    %v1113 = vmul.f32 %v1104, 1.442695
    %v1114 = vpow.pop %v1113
    %v1115 = vmul.f32 %v1105, 1.442695
    %v1116 = vpow.pop %v1115
    %v1117 = vmul.f32 %v1106, 1.442695
    %v1118 = vpow.pop %v1117
    %v1119 = vmul.f32 %v1107, 1.442695
    %v1120 = vpow.pop %v1119
    %v1121 = vmul.f32 %v1108, 1.442695
    %v1122 = vpow.pop %v1121
    %v1123 = vadd.f32 %v1110, 1.0
    %v1124 = vadd.f32 %v1112, 1.0
    %v1125 = vadd.f32 %v1114, 1.0
    %v1126 = vadd.f32 %v1116, 1.0
    %v1127 = vadd.f32 %v1118, 1.0
    %v1128 = vadd.f32 %v1120, 1.0
    %v1129 = vadd.f32 %v1122, 1.0
    %v1130 = vrcp.pop %v1123
    %v1131 = vrcp.pop %v1124
    %v1132 = vrcp.pop %v1125
    %v1133 = vrcp.pop %v1126
    %v1134 = vrcp.pop %v1127
    %v1135 = vrcp.pop %v1128
    %v1136 = vrcp.pop %v1129
    %1137 = vst [vmem:[#allocation2] sm:$0xff] %v1130
    %1138 = vst [vmem:[#allocation2 + $0x8] sm:$0xff] %v1131
    %1139 = vst [vmem:[#allocation2 + $0x10] sm:$0xff] %v1132
    %1140 = vst [vmem:[#allocation2 + $0x18] sm:$0xff] %v1133
    %1141 = vst [vmem:[#allocation2 + $0x20] sm:$0xff] %v1134
    %1142 = vst [vmem:[#allocation2 + $0x28] sm:$0xff] %v1135
    %1143 = vst.msk [vmem:[#allocation2 + $0x30] sm:$0xff] %vm422, %v1136
    // Predicated region
    $region14: #{autoencoder_forward.1} parent=1 // pred_check
      _
    $region15: #{autoencoder_forward.1} parent=1 // pred_check_branch
      %1145 = sbr.rel (0) target = $region17
    $region16: #{autoencoder_forward.1} parent=1 // pred_region
      %s1147 = ssub.s32 896, 896
      %1148 = vsyncadd [#allocation3], %s1147
      %s1150 = sshll.u32 [#allocation2], 4
      %s1151 = int_to_ptr.vmem [resolvable:$true] %s1150
      %1153 = dma.vmem_to_hbm [thread:$0]  %s1151, 896, %s3, [#allocation3]
    $region17: #{autoencoder_forward.1} parent=1 // pred_fallthru
      _
    // Predicated region
    $region18: #{autoencoder_forward.1} parent=1 // pred_check
      _
    $region19: #{autoencoder_forward.1} parent=1 // pred_check_branch
      %1155 = sbr.rel (0) target = $region21
    $region20: #{autoencoder_forward.1} parent=1 // pred_region
      %1156 = dma.done [#allocation3], 896
    $region21: #{autoencoder_forward.1} parent=1 // pred_fallthru
      _
    %1157 = vsyncpa [#allocation3], 1

</llo_original>
